<compile_context>
chip_gen: v6e
topology: v6e:2x2x1
jax: 0.10.0
libtpu: 0.0.40
codegen_flags: <defaults>
</compile_context>

<pallas_src>
import functools

import jax
import jax.numpy as jnp
from jax import lax
from jax.experimental import pallas as pl
from jax.experimental.pallas import tpu as pltpu


def _round_up(x, m):
    return ((x + m - 1) // m) * m


def _tap_gemm_bn_relu_kernel(x_ref, w_ref, b_ref, o_ref, acc_ref, *, taps):
    """One grid step.

    x_ref:   (slab_rows, tile_c)   bf16  padded-scanline slab (rows = Wp-wide scanlines)
    w_ref:   (K*K, tile_c, Coutp)  bf16  BN-folded per-tap weights
    b_ref:   (1, Coutp)            f32   BN-folded bias
    o_ref:   (m_rows, Coutp)             lane-dense output tile
    acc_ref: (m_rows, Coutp)       f32   VMEM accumulator across the Cin grid axis
    """
    c = pl.program_id(2)
    m_rows = o_ref.shape[0]

    @pl.when(c == 0)
    def _init():
        acc_ref[...] = jnp.zeros_like(acc_ref)

    acc = acc_ref[...]
    for t, shift in enumerate(taps):              # static unroll, <= 9 taps
        lhs = x_ref[shift:shift + m_rows, :]      # row-shifted view of the slab
        acc = acc + jnp.dot(lhs, w_ref[t], preferred_element_type=jnp.float32)
    acc_ref[...] = acc

    @pl.when(c == pl.num_programs(2) - 1)
    def _finalize():
        o_ref[...] = jnp.maximum(acc_ref[...] + b_ref[...], 0.0).astype(o_ref.dtype)


def multi_scale_cnn_forward(x, conv_w, bn_gamma, bn_beta, bn_mean, bn_var,
                            *, dilation=1, eps=1e-5):
    """multiScaleCNN forward.

    x:       (B, Cin, H, W)   NCHW, matching the PyTorch module input.
    conv_w:  (Cout, Cin, K, K) PyTorch Conv2d weight layout (bias=False).
    bn_*:    BatchNorm2d eval-mode parameters / running statistics, shape (Cout,).
    """
    B, Cin, H, W = x.shape
    Cout, _, K, _ = conv_w.shape
    p = 0 if K == 1 else dilation                 # mirrors ASPP_module.__init__
    Wp = W + 2 * p
    KK = K * K

    # ---- tiling choices --------------------------------------------------------
    Coutp = _round_up(Cout, 128)                  # lane-dense output columns
    if Cin <= 256:                                # single Cin block (full-dim block)
        tile_c, cin_pad = Cin, Cin
    else:                                         # Cin reduction axis, 128-aligned tiles
        tile_c = 256
        cin_pad = _round_up(Cin, tile_c)
    grid_c = cin_pad // tile_c

    tile_h = max(1, min(H, 1024 // Wp))           # M tile = tile_h * Wp scanline rows
    if B * ((H + tile_h - 1) // tile_h) < 2 and tile_h > 1:
        tile_h = max(1, (tile_h + 1) // 2)        # keep >=2 parallel steps (2 TCs on v7x)
    grid_h = (H + tile_h - 1) // tile_h
    Ho = grid_h * tile_h
    m_rows = tile_h * Wp

    # ---- fold eval-mode BatchNorm into per-tap GEMM weights + bias --------------
    scale = bn_gamma / jnp.sqrt(bn_var + eps)                        # (Cout,)
    w_t = jnp.transpose(conv_w, (2, 3, 1, 0)).reshape(KK, Cin, Cout)  # (t, ci, co)
    w_t = w_t * scale[None, None, :]
    w_taps = jnp.zeros((KK, cin_pad, Coutp), jnp.float32)
    w_taps = w_taps.at[:, :Cin, :Cout].set(w_t).astype(jnp.bfloat16)
    b_fold = jnp.zeros((1, Coutp), jnp.float32)
    b_fold = b_fold.at[0, :Cout].set(bn_beta - bn_mean * scale)

    # ---- build per-(batch, h-tile) flattened input slabs (bf16) -----------------
    # Rows are padded-width (Wp) scanlines.  Tap (ky, kx) of the dilated conv is the
    # slab shifted down by ky*d*Wp + kx*d rows; output columns x >= W of each
    # scanline are junk and sliced off below.  Only h-tile halos get duplicated.
    x_nhwc = jnp.transpose(x, (0, 2, 3, 1))                          # (B, H, W, Cin)
    x_pad = jnp.pad(x_nhwc, ((0, 0), (p, p + Ho - H), (p, p), (0, cin_pad - Cin)))
    flat = x_pad.reshape(B, (Ho + 2 * p) * Wp, cin_pad)

    taps = tuple((ky * dilation) * Wp + kx * dilation
                 for ky in range(K) for kx in range(K))
    slab_rows = _round_up(taps[-1] + m_rows, 8)
    need = (grid_h - 1) * tile_h * Wp + slab_rows
    if need > flat.shape[1]:
        flat = jnp.pad(flat, ((0, 0), (0, need - flat.shape[1]), (0, 0)))
    slabs = jnp.stack([flat[:, i * tile_h * Wp: i * tile_h * Wp + slab_rows, :]
                       for i in range(grid_h)], axis=1).astype(jnp.bfloat16)
    # slabs: (B, grid_h, slab_rows, cin_pad)

    cost = pl.CostEstimate(
        flops=2 * B * grid_h * m_rows * KK * cin_pad * Coutp,
        transcendentals=0,
        bytes_accessed=(slabs.size * 2 + w_taps.size * 2 + b_fold.size * 4
                        + B * grid_h * m_rows * Coutp * 4))

    out = pl.pallas_call(
        functools.partial(_tap_gemm_bn_relu_kernel, taps=taps),
        out_shape=jax.ShapeDtypeStruct((B, grid_h, m_rows, Coutp), x.dtype),
        grid_spec=pltpu.PrefetchScalarGridSpec(
            num_scalar_prefetch=0,
            grid=(B, grid_h, grid_c),
            in_specs=[
                # padded-scanline slab for this (batch, h-tile), Cin block c
                pl.BlockSpec((None, None, slab_rows, tile_c),
                             lambda b, i, c: (b, i, 0, c)),
                # BN-folded per-tap weights (grid-invariant along b, i)
                pl.BlockSpec((KK, tile_c, Coutp), lambda b, i, c: (0, c, 0)),
                # BN-folded bias (grid-invariant)
                pl.BlockSpec((1, Coutp), lambda b, i, c: (0, 0)),
            ],
            out_specs=pl.BlockSpec((None, None, m_rows, Coutp),
                                   lambda b, i, c: (b, i, 0, 0)),
            scratch_shapes=[pltpu.VMEM((m_rows, Coutp), jnp.float32)],
        ),
        compiler_params=pltpu.CompilerParams(
            dimension_semantics=("parallel", "parallel", "arbitrary"),
            vmem_limit_bytes=32 * 1024 * 1024),
        cost_estimate=cost,
    )(slabs, w_taps, b_fold)

    # drop junk scanline columns (>= W), padded Cout lanes, padded H rows; back to NCHW
    out = out.reshape(B, grid_h, tile_h, Wp, Coutp)[:, :, :, :W, :Cout]
    out = out.reshape(B, Ho, W, Cout)[:, :H]
    return jnp.transpose(out, (0, 3, 1, 2))


def multi_scale_cnn_reference(x, conv_w, bn_gamma, bn_beta, bn_mean, bn_var,
                              *, dilation=1, eps=1e-5):
    """Pure-JAX reference mirroring Conv2d(dilated, no bias) + eval BN + ReLU."""
    K = conv_w.shape[-1]
    padding = 0 if K == 1 else dilation
    y = lax.conv_general_dilated(
        x, conv_w, window_strides=(1, 1),
        padding=[(padding, padding), (padding, padding)],
        rhs_dilation=(dilation, dilation),
        dimension_numbers=("NCHW", "OIHW", "NCHW"))
    scale = bn_gamma / jnp.sqrt(bn_var + eps)
    y = y * scale[None, :, None, None] + (bn_beta - bn_mean * scale)[None, :, None, None]
    return jnp.maximum(y, 0.0)


if __name__ == "__main__":
    B, Cin, H, W = 2, 4, 16, 16
    Cout = 8

    key = jax.random.PRNGKey(0)
    kx_, kw1, kw3, kg, kb, km, kv = jax.random.split(key, 7)

    x = jax.random.normal(kx_, (B, Cin, H, W), dtype=jnp.float32)
    bn_gamma = 1.0 + 0.1 * jax.random.normal(kg, (Cout,), dtype=jnp.float32)
    bn_beta = 0.1 * jax.random.normal(kb, (Cout,), dtype=jnp.float32)
    bn_mean = 0.1 * jax.random.normal(km, (Cout,), dtype=jnp.float32)
    bn_var = 0.5 + jnp.abs(jax.random.normal(kv, (Cout,), dtype=jnp.float32))

    configs = [
        # (dilation, conv weight) — dilation=1 -> 1x1 conv (module default),
        # dilation=2 -> 3x3 dilated conv with padding=2.
        (1, 0.1 * jax.random.normal(kw1, (Cout, Cin, 1, 1), dtype=jnp.float32)),
        (2, 0.1 * jax.random.normal(kw3, (Cout, Cin, 3, 3), dtype=jnp.float32)),
    ]

    for dilation, conv_w in configs:
        out = multi_scale_cnn_forward(x, conv_w, bn_gamma, bn_beta, bn_mean,
                                      bn_var, dilation=dilation)
        out = jax.block_until_ready(out)
        ref = multi_scale_cnn_reference(x, conv_w, bn_gamma, bn_beta, bn_mean,
                                        bn_var, dilation=dilation)
        assert out.shape == (B, Cout, H, W)
        # bf16 operands + f32 accumulation -> loosened tolerance vs the pure-f32 ref.
        err = float(jnp.max(jnp.abs(out - ref)))
        assert jnp.allclose(out, ref, atol=5e-2, rtol=5e-2), \
            f"mismatch vs reference (dilation={dilation}), max abs err={err}"

    print("KERNEL_OK")
</pallas_src>

<mosaic_0001>
module attributes {stable_mosaic.version = 11 : i64} {
  func.func @_tap_gemm_bn_relu_kernel(%arg0: i32, %arg1: i32, %arg2: i32, %arg3: memref<1x1x256x4xbf16, #tpu.memory_space<vmem>>, %arg4: memref<1x4x128xbf16, #tpu.memory_space<vmem>>, %arg5: memref<1x128xf32, #tpu.memory_space<vmem>>, %arg6: memref<1x1x256x128xf32, #tpu.memory_space<vmem>>, %arg7: memref<256x128xf32, #tpu.memory_space<vmem>>) attributes {dimension_semantics = [#tpu.dimension_semantics<parallel>, #tpu.dimension_semantics<parallel>, #tpu.dimension_semantics<arbitrary>], iteration_bounds = array<i64: 2, 1, 1>, scalar_prefetch = 0 : i64, scratch_operands = 1 : i64, tpu.core_type = #tpu.core_type<tc>, window_params = [{transform_indices = @transform_0, window_bounds = array<i64: 1, 1, 256, 4>}, {transform_indices = @transform_1, window_bounds = array<i64: 1, 4, 128>}, {pipeline_mode = #tpu.pipeline_mode<synchronous>, transform_indices = @transform_2, window_bounds = array<i64: 1, 128>}, {transform_indices = @transform_3, window_bounds = array<i64: 1, 1, 256, 128>}]} {
    %c0_i32 = arith.constant 0 : i32
    %0 = arith.cmpi eq, %arg2, %c0_i32 : i32
    %1 = arith.extui %0 : i1 to i32
    %c0_i32_0 = arith.constant 0 : i32
    %2 = arith.cmpi ne, %1, %c0_i32_0 : i32
    scf.if %2 {
      %cst_13 = arith.constant 0.000000e+00 : f32
      %14 = vector.broadcast %cst_13 : f32 to vector<256x128xf32>
      %c0_14 = arith.constant 0 : index
      %c0_15 = arith.constant 0 : index
      %15 = vector.load %arg7[%c0_14, %c0_15] : memref<256x128xf32, #tpu.memory_space<vmem>>, vector<256x128xf32>
      tpu.vector_store %arg7[%c0_14, %c0_15], %14 {strides = array<i32>} : memref<256x128xf32, #tpu.memory_space<vmem>>, vector<256x128xf32>,
    } else {
    }
    %c0 = arith.constant 0 : index
    %c0_1 = arith.constant 0 : index
    %3 = vector.load %arg7[%c0, %c0_1] : memref<256x128xf32, #tpu.memory_space<vmem>>, vector<256x128xf32>
    %c0_2 = arith.constant 0 : index
    %c0_3 = arith.constant 0 : index
    %c0_4 = arith.constant 0 : index
    %c0_5 = arith.constant 0 : index
    %4 = vector.load %arg3[%c0_2, %c0_3, %c0_4, %c0_5] : memref<1x1x256x4xbf16, #tpu.memory_space<vmem>>, vector<1x1x256x4xbf16>
    %5 = vector.shape_cast %4 : vector<1x1x256x4xbf16> to vector<256x4xbf16>
    %c0_6 = arith.constant 0 : index
    %c0_7 = arith.constant 0 : index
    %c0_8 = arith.constant 0 : index
    %6 = vector.load %arg4[%c0_6, %c0_7, %c0_8] : memref<1x4x128xbf16, #tpu.memory_space<vmem>>, vector<1x4x128xbf16>
    %7 = vector.shape_cast %6 : vector<1x4x128xbf16> to vector<4x128xbf16>
    %cst = arith.constant dense<0.000000e+00> : vector<256x128xf32>
    %8 = tpu.matmul %5, %7, %cst {dimension_numbers = #tpu.dot_dimension_numbers<[1], [0], [0], [1], [0, 0, 1, 1], [], []>} : vector<256x4xbf16>, vector<4x128xbf16>, vector<256x128xf32> -> vector<256x128xf32>
    %9 = arith.addf %3, %8 : vector<256x128xf32>
    %c0_9 = arith.constant 0 : index
    %c0_10 = arith.constant 0 : index
    %10 = vector.load %arg7[%c0_9, %c0_10] : memref<256x128xf32, #tpu.memory_space<vmem>>, vector<256x128xf32>
    tpu.vector_store %arg7[%c0_9, %c0_10], %9 {strides = array<i32>} : memref<256x128xf32, #tpu.memory_space<vmem>>, vector<256x128xf32>,
    %c0_i32_11 = arith.constant 0 : i32
    %11 = arith.cmpi eq, %arg2, %c0_i32_11 : i32
    %12 = arith.extui %11 : i1 to i32
    %c0_i32_12 = arith.constant 0 : i32
    %13 = arith.cmpi ne, %12, %c0_i32_12 : i32
    scf.if %13 {
      %c0_13 = arith.constant 0 : index
      %c0_14 = arith.constant 0 : index
      %14 = vector.load %arg7[%c0_13, %c0_14] : memref<256x128xf32, #tpu.memory_space<vmem>>, vector<256x128xf32>
      %c0_15 = arith.constant 0 : index
      %c0_16 = arith.constant 0 : index
      %15 = vector.load %arg5[%c0_15, %c0_16] : memref<1x128xf32, #tpu.memory_space<vmem>>, vector<1x128xf32>
      %16 = vector.broadcast %15 : vector<1x128xf32> to vector<256x128xf32>
      %17 = arith.addf %14, %16 : vector<256x128xf32>
      %cst_17 = arith.constant 0.000000e+00 : f32
      %18 = vector.broadcast %cst_17 : f32 to vector<256x128xf32>
      %19 = arith.maximumf %17, %18 : vector<256x128xf32>
      %c0_18 = arith.constant 0 : index
      %c0_19 = arith.constant 0 : index
      %c0_20 = arith.constant 0 : index
      %c0_21 = arith.constant 0 : index
      %20 = vector.load %arg6[%c0_18, %c0_19, %c0_20, %c0_21] : memref<1x1x256x128xf32, #tpu.memory_space<vmem>>, vector<1x1x256x128xf32>
      %21 = vector.shape_cast %20 : vector<1x1x256x128xf32> to vector<256x128xf32>
      %22 = vector.shape_cast %19 : vector<256x128xf32> to vector<1x1x256x128xf32>
      tpu.vector_store %arg6[%c0_18, %c0_19, %c0_20, %c0_21], %22 {strides = array<i32>} : memref<1x1x256x128xf32, #tpu.memory_space<vmem>>, vector<1x1x256x128xf32>,
    } else {
    }
    return
  }
  func.func @transform_0(%arg0: i32, %arg1: i32, %arg2: i32) -> (i32, i32, i32, i32) {
    %c0_i32 = arith.constant 0 : i32
    %c0_i32_0 = arith.constant 0 : i32
    return %arg0, %arg1, %c0_i32, %arg2 : i32, i32, i32, i32
  }
  func.func @transform_1(%arg0: i32, %arg1: i32, %arg2: i32) -> (i32, i32, i32) {
    %c0_i32 = arith.constant 0 : i32
    %c0_i32_0 = arith.constant 0 : i32
    %c0_i32_1 = arith.constant 0 : i32
    return %c0_i32, %arg2, %c0_i32_0 : i32, i32, i32
  }
  func.func @transform_2(%arg0: i32, %arg1: i32, %arg2: i32) -> (i32, i32) {
    %c0_i32 = arith.constant 0 : i32
    %c0_i32_0 = arith.constant 0 : i32
    %c0_i32_1 = arith.constant 0 : i32
    return %c0_i32, %c0_i32_0 : i32, i32
  }
  func.func @transform_3(%arg0: i32, %arg1: i32, %arg2: i32) -> (i32, i32, i32, i32) {
    %c0_i32 = arith.constant 0 : i32
    %c0_i32_0 = arith.constant 0 : i32
    %c0_i32_1 = arith.constant 0 : i32
    return %arg0, %arg1, %c0_i32, %c0_i32_0 : i32, i32, i32, i32
  }
}

</mosaic_0001>

<llo_original>
// kernel: tpu_custom_call.1
$region0: #{tpu_custom_call.1}
  #allocation0 [shape = 'u32[]', space=smem, size = 0x4, offset = 0x4, fixed_abs, tag = 'smem constant byte address 0x4 - core index']
  #allocation1 [shape = 'u32[144,128]{1,0:T(1,128)}', space=vmem, size = 0x12000, scoped, tag = 'internal scratch']
  #allocation2 [shape = 'f32[256,128]{1,0:T(8,128)}', space=vmem, size = 0x20000, scoped, tag = 'scratch operand']
  %s0 = inlined_call_operand.vmem [shape: bf16[2,1,256,4], index: 0, kind: input, shape index: {}]
  %s1 = inlined_call_operand.vmem [shape: bf16[1,4,128], index: 1, kind: input, shape index: {}]
  %s2 = inlined_call_operand.vmem [shape: f32[1,128], index: 2, kind: input, shape index: {}]
  %s3 = inlined_call_operand.hbm [shape: f32[2,1,256,128], index: 3, kind: output, shape index: {}]
  %s4 = sld [smem:[#allocation0]]
  $region53: #{tpu_custom_call.1} parent=0
    _
  %s6 = ssub.s32 1, %s4
  %s7 = scalar_select 0, %s6, %s4
  $region1: #{tpu_custom_call.1} parent=0
    #allocation3 [shape = 'u8[262144]{0}', space=vmem, size = 0x40000, scoped, tag = 'output window, operand 0']
    #allocation4 [shape = 's32[2]{0}', space=sflag, size = 0x8, scoped, tag = 'scoped memory for tpu_custom_call.1']
    %8 = vsyncpa [#allocation4], 0
    %s9 = scalar_lea.sflag [#allocation4], 1
    %10 = vsyncpa %s9, 0
    loop: start=0, step=1, limit=4
    $region2: #{tpu_custom_call.1} parent=1 // loop_pre_header
      _
    $region3: #{tpu_custom_call.1} parent=1 // loop_header
      %s12 = sphi 0, %s16
      %p13 = scmp.ge.s32.totalorder %s12, 4
      %s19 = sphi 0, %s38
      %s20 = sphi 0, %s34
      %s21 = sphi 0, %s30
      %s22 = sphi 0, %s19
      %s23 = sphi 0, %s20
      %s24 = sphi 0, %s21
      %s25 = sphi 0, %s22
      %s26 = sphi 0, %s23
      %s27 = sphi 0, %s24
      %s45 = sphi 0, %s47
      %s48 = sphi 0, %s45
      %s49 = sphi 0, %s48
      %s65 = sphi 0, %s49
      %s71 = sphi 0, %s73
      %s74 = sphi 0, %s71
      %s75 = sphi 0, %s74
      %s91 = sphi 0, %s75
      %s95 = sphi 0, %s95
      %s97 = sphi 0, %s95
      %s98 = sphi 0, %s97
      %s112 = sphi 0, %s98
      %s120 = sphi 0, %s122
      %s123 = sphi 0, %s120
      %s124 = sphi 0, %s123
      %s140 = sphi 0, %s124
    $region4: #{tpu_custom_call.1} parent=1 // loop_header_branch
      %15 = sbr.rel (%p13) target = $region8
    $region5: #{tpu_custom_call.1} parent=1 // loop_body
      %s17 = ssub.s32 %s12, 1
      %s18 = ssub.s32 %s12, 2
      %s28 = sadd.s32 1, %s21
      %p29 = scmp.ge.s32.totalorder %s28, 1
      %s30 = scalar_select %p29, 0, %s28
      %s31 = sadd.s32 1, %s20
      %s32 = scalar_select %p29, %s31, %s20
      %p33 = scmp.ge.s32.totalorder %s32, 1
      %s34 = scalar_select %p33, 0, %s32
      %s35 = sadd.s32 1, %s19
      %s36 = scalar_select %p33, %s35, %s19
      %p37 = scmp.ge.s32.totalorder %s36, 2
      %s38 = scalar_select %p37, 0, %s36
      %s39 = ssub.s32 %s19, %s38
      %s40 = ssub.s32 %s20, %s34
      %s41 = sor.u32 %s39, %s40
      %s42 = ssub.s32 %s21, %s30
      %s43 = sor.u32 %s41, %s42
      %p44 = scmp.eq.s32.totalorder %s43, 0
      %s46 = sadd.s32 %s45, 1
      %s47 = scalar_select %p44, %s45, %s46
      %p50 = pneg %p44
      %p51 = scmp.eq.s32.totalorder %s12, 1
      %p52 = por %p50, %p51
      %p53 = scmp.ne.s32.totalorder %s45, %s48
      %p54 = scmp.eq.s32.totalorder %s12, 0
      %p55 = por %p53, %p54
      %p56 = scmp.ne.s32.totalorder %s45, %s48
      %p57 = scmp.eq.s32.totalorder %s17, 1
      %p58 = por %p56, %p57
      %p59 = scmp.ne.s32.totalorder %s48, %s49
      %p60 = scmp.eq.s32.totalorder %s17, 0
      %p61 = por %p59, %p60
      %p62 = scmp.ne.s32.totalorder %s48, %s49
      %p63 = scmp.eq.s32.totalorder %s18, 1
      %p64 = por %p62, %p63
      %p66 = scmp.ne.s32.totalorder %s49, %s65
      %p67 = scmp.eq.s32.totalorder %s18, 0
      %p68 = por %p66, %p67
      %s69 = ssub.s32 %s21, %s30
      %p70 = scmp.eq.s32.totalorder %s69, 0
      %s72 = sadd.s32 %s71, 1
      %s73 = scalar_select %p70, %s71, %s72
      %p76 = pneg %p70
      %p77 = scmp.eq.s32.totalorder %s12, 1
      %p78 = por %p76, %p77
      %p79 = scmp.ne.s32.totalorder %s71, %s74
      %p80 = scmp.eq.s32.totalorder %s12, 0
      %p81 = por %p79, %p80
      %p82 = scmp.ne.s32.totalorder %s71, %s74
      %p83 = scmp.eq.s32.totalorder %s17, 1
      %p84 = por %p82, %p83
      %p85 = scmp.ne.s32.totalorder %s74, %s75
      %p86 = scmp.eq.s32.totalorder %s17, 0
      %p87 = por %p85, %p86
      %p88 = scmp.ne.s32.totalorder %s74, %s75
      %p89 = scmp.eq.s32.totalorder %s18, 1
      %p90 = por %p88, %p89
      %p92 = scmp.ne.s32.totalorder %s75, %s91
      %p93 = scmp.eq.s32.totalorder %s18, 0
      %p94 = por %p92, %p93
      %s96 = sadd.s32 %s95, 1
      %p99 = scmp.eq.s32.totalorder %s12, 1
      %p100 = scmp.ne.s32.totalorder %s95, %s97
      %p101 = scmp.eq.s32.totalorder %s12, 0
      %p102 = por %p100, %p101
      %p103 = scmp.ne.s32.totalorder %s95, %s97
      %p104 = scmp.eq.s32.totalorder %s17, 1
      %p105 = por %p103, %p104
      %p106 = scmp.ne.s32.totalorder %s97, %s98
      %p107 = scmp.eq.s32.totalorder %s17, 0
      %p108 = por %p106, %p107
      %p109 = scmp.ne.s32.totalorder %s97, %s98
      %p110 = scmp.eq.s32.totalorder %s18, 1
      %p111 = por %p109, %p110
      %p113 = scmp.ne.s32.totalorder %s98, %s112
      %p114 = scmp.eq.s32.totalorder %s18, 0
      %p115 = por %p113, %p114
      %s116 = ssub.s32 %s19, %s38
      %s117 = ssub.s32 %s20, %s34
      %s118 = sor.u32 %s116, %s117
      %p119 = scmp.eq.s32.totalorder %s118, 0
      %s121 = sadd.s32 %s120, 1
      %s122 = scalar_select %p119, %s120, %s121
      %p125 = pneg %p119
      %p126 = scmp.eq.s32.totalorder %s12, 1
      %p127 = por %p125, %p126
      %p128 = scmp.ne.s32.totalorder %s120, %s123
      %p129 = scmp.eq.s32.totalorder %s12, 0
      %p130 = por %p128, %p129
      %p131 = scmp.ne.s32.totalorder %s120, %s123
      %p132 = scmp.eq.s32.totalorder %s17, 1
      %p133 = por %p131, %p132
      %p134 = scmp.ne.s32.totalorder %s123, %s124
      %p135 = scmp.eq.s32.totalorder %s17, 0
      %p136 = por %p134, %p135
      %p137 = scmp.ne.s32.totalorder %s123, %s124
      %p138 = scmp.eq.s32.totalorder %s18, 1
      %p139 = por %p137, %p138
      %p141 = scmp.ne.s32.totalorder %s124, %s140
      %p142 = scmp.eq.s32.totalorder %s18, 0
      %p143 = por %p141, %p142
      %p144 = scmp.le.s32.totalorder 1, %s12
      %p145 = scmp.lt.s32.totalorder %s12, 3
      %p146 = pnand %p144, %p145
      %p147 = pneg %p146
      // Predicated region
      $region9: #{tpu_custom_call.1} parent=5 // pred_check
        _
      $region10: #{tpu_custom_call.1} parent=5 // pred_check_branch
        %149 = sbr.rel (%p146) target = $region12
      $region11: #{tpu_custom_call.1} parent=5 // pred_region
        %s150 = ssub.s32 %s12, 1
        // Predicated region
        $region13: #{tpu_custom_call.1} parent=11 // pred_check
          %p151 = pneg %p87
        $region14: #{tpu_custom_call.1} parent=11 // pred_check_branch
          %153 = sbr.rel (%p151) target = $region16
        $region15: #{tpu_custom_call.1} parent=11 // pred_region
          %p154 = scmp.lt.s32.totalorder %s24, 0
          %s155 = scalar_select %p154, %s24, 0
          %s156 = smul.addr %s155, 2
          %s157 = scalar_lea.vmem %s1, %s156
        $region16: #{tpu_custom_call.1} parent=11 // pred_fallthru
          _
        // Predicated region
        $region17: #{tpu_custom_call.1} parent=11 // pred_check
          %p158 = pneg %p108
        $region18: #{tpu_custom_call.1} parent=11 // pred_check_branch
          %160 = sbr.rel (%p158) target = $region20
        $region19: #{tpu_custom_call.1} parent=11 // pred_region
          _
        $region20: #{tpu_custom_call.1} parent=11 // pred_fallthru
          _
      $region12: #{tpu_custom_call.1} parent=5 // pred_fallthru
        _
      %p161 = scmp.lt.s32.totalorder %s12, 2
      // Predicated region
      $region21: #{tpu_custom_call.1} parent=5 // pred_check
        %p162 = pneg %p161
      $region22: #{tpu_custom_call.1} parent=5 // pred_check_branch
        %164 = sbr.rel (%p162) target = $region24
      $region23: #{tpu_custom_call.1} parent=5 // pred_region
        // Predicated region
        $region25: #{tpu_custom_call.1} parent=23 // pred_check
          %p165 = pneg %p55
        $region26: #{tpu_custom_call.1} parent=23 // pred_check_branch
          %167 = sbr.rel (%p165) target = $region28
        $region27: #{tpu_custom_call.1} parent=23 // pred_region
          %p168 = scmp.lt.s32.totalorder %s19, 1
          %s169 = scalar_select %p168, %s19, 1
          %p170 = scmp.lt.s32.totalorder %s20, 0
          %s171 = scalar_select %p170, %s20, 0
          %p172 = scmp.lt.s32.totalorder %s21, 0
          %s173 = scalar_select %p172, %s21, 0
          %s174 = smul.addr %s171, 32
          %s175 = sadd.s32 %s173, %s174
          %s176 = smul.addr %s169, 32
          %s177 = sadd.s32 %s175, %s176
          %s178 = smul.addr %s177, 4
          %s179 = scalar_lea.vmem %s0, %s178
        $region28: #{tpu_custom_call.1} parent=23 // pred_fallthru
          _
      $region24: #{tpu_custom_call.1} parent=5 // pred_fallthru
        _
      %p180 = scmp.le.s32.totalorder 1, %s12
      %p181 = scmp.lt.s32.totalorder %s12, 3
      %p182 = pnand %p180, %p181
      %p183 = pneg %p182
      // Predicated region
      $region29: #{tpu_custom_call.1} parent=5 // pred_check
        _
      $region30: #{tpu_custom_call.1} parent=5 // pred_check_branch
        %185 = sbr.rel (%p182) target = $region32
      $region31: #{tpu_custom_call.1} parent=5 // pred_region
        %s186 = ssub.s32 %s12, 1
        %p187 = scmp.lt.s32.totalorder %s22, 1
        %s188 = scalar_select %p187, %s22, 1
        %p189 = scmp.lt.s32.totalorder %s23, 0
        %s190 = scalar_select %p189, %s23, 0
        %p191 = scmp.lt.s32.totalorder %s24, 0
        %s192 = scalar_select %p191, %s24, 0
        %s193 = smul.addr %s190, 32
        %s194 = sadd.s32 %s192, %s193
        %s195 = smul.addr %s188, 32
        %s196 = sadd.s32 %s194, %s195
        %s197 = smul.addr %s196, 4
        %s198 = scalar_lea.vmem %s0, %s197
        %p199 = pneg %p61
        %p200 = pneg %p58
        %p201 = scmp.lt.s32.totalorder %s24, 0
        %s202 = scalar_select %p201, %s24, 0
        %s203 = smul.addr %s202, 2
        %s204 = scalar_lea.vmem %s1, %s203
        %p205 = pneg %p87
        %p206 = pneg %p84
        %p207 = pneg %p108
        %p208 = pneg %p105
        %p209 = pneg %p136
        %p210 = pneg %p133
        %s211 = sand.u32 %s123, 1
        %s212 = scalar_lea.sflag [#allocation4], %s211
        %s213 = sand.u32 %s123, 1
        %s214 = smul.addr %s213, 256
        %s215 = scalar_lea.vmem [#allocation3], %s214
        %p216 = scmp.lt.s32.totalorder %s22, 1
        %s217 = scalar_select %p216, %s22, 1
        %p218 = scmp.lt.s32.totalorder %s23, 0
        %s219 = scalar_select %p218, %s23, 0
        %p220 = scmp.lt.s32.totalorder %s24, 0
        %s221 = scalar_select %p220, %s24, 0
        %s222 = smul.addr %s219, 32
        %s223 = sadd.s32 %s221, %s222
        %s224 = smul.addr %s217, 32
        %s225 = sadd.s32 %s223, %s224
        %s226 = smul.addr %s225, 4
        %s227 = scalar_lea.vmem %s0, %s226
        %p228 = scmp.lt.s32.totalorder %s24, 0
        %s229 = scalar_select %p228, %s24, 0
        %s230 = smul.addr %s229, 2
        %s231 = scalar_lea.vmem %s1, %s230
        %p233 = scmp.eq.s32.totalorder %s24, 0
        // Predicated region
        $region33: #{tpu_custom_call.1} parent=31 // pred_check
          %p234 = pneg %p233
        $region34: #{tpu_custom_call.1} parent=31 // pred_check_branch
          %236 = sbr.rel (%p234) target = $region36
        $region35: #{tpu_custom_call.1} parent=31 // pred_region
          %237 = vst [vmem:[#allocation2] sm:$0xff] 0.0
          %238 = vst [vmem:[#allocation2 + $0x8] sm:$0xff] 0.0
          %239 = vst [vmem:[#allocation2 + $0x10] sm:$0xff] 0.0
          %240 = vst [vmem:[#allocation2 + $0x18] sm:$0xff] 0.0
          %241 = vst [vmem:[#allocation2 + $0x20] sm:$0xff] 0.0
          %242 = vst [vmem:[#allocation2 + $0x28] sm:$0xff] 0.0
          %243 = vst [vmem:[#allocation2 + $0x30] sm:$0xff] 0.0
          %244 = vst [vmem:[#allocation2 + $0x38] sm:$0xff] 0.0
          %245 = vst [vmem:[#allocation2 + $0x40] sm:$0xff] 0.0
          %246 = vst [vmem:[#allocation2 + $0x48] sm:$0xff] 0.0
          %247 = vst [vmem:[#allocation2 + $0x50] sm:$0xff] 0.0
          %248 = vst [vmem:[#allocation2 + $0x58] sm:$0xff] 0.0
          %249 = vst [vmem:[#allocation2 + $0x60] sm:$0xff] 0.0
          %250 = vst [vmem:[#allocation2 + $0x68] sm:$0xff] 0.0
          %251 = vst [vmem:[#allocation2 + $0x70] sm:$0xff] 0.0
          %252 = vst [vmem:[#allocation2 + $0x78] sm:$0xff] 0.0
          %253 = vst [vmem:[#allocation2 + $0x80] sm:$0xff] 0.0
          %254 = vst [vmem:[#allocation2 + $0x88] sm:$0xff] 0.0
          %255 = vst [vmem:[#allocation2 + $0x90] sm:$0xff] 0.0
          %256 = vst [vmem:[#allocation2 + $0x98] sm:$0xff] 0.0
          %257 = vst [vmem:[#allocation2 + $0xa0] sm:$0xff] 0.0
          %258 = vst [vmem:[#allocation2 + $0xa8] sm:$0xff] 0.0
          %259 = vst [vmem:[#allocation2 + $0xb0] sm:$0xff] 0.0
          %260 = vst [vmem:[#allocation2 + $0xb8] sm:$0xff] 0.0
          %261 = vst [vmem:[#allocation2 + $0xc0] sm:$0xff] 0.0
          %262 = vst [vmem:[#allocation2 + $0xc8] sm:$0xff] 0.0
          %263 = vst [vmem:[#allocation2 + $0xd0] sm:$0xff] 0.0
          %264 = vst [vmem:[#allocation2 + $0xd8] sm:$0xff] 0.0
          %265 = vst [vmem:[#allocation2 + $0xe0] sm:$0xff] 0.0
          %266 = vst [vmem:[#allocation2 + $0xe8] sm:$0xff] 0.0
          %267 = vst [vmem:[#allocation2 + $0xf0] sm:$0xff] 0.0
          %268 = vst [vmem:[#allocation2 + $0xf8] sm:$0xff] 0.0
        $region36: #{tpu_custom_call.1} parent=31 // pred_fallthru
          _
        %v269 = vld [vmem:[#allocation2] sm:$0xff]
        %v270 = vld [vmem:[#allocation2 + $0x8] sm:$0xff]
        %v271 = vld [vmem:[#allocation2 + $0x10] sm:$0xff]
        %v272 = vld [vmem:[#allocation2 + $0x18] sm:$0xff]
        %v273 = vld [vmem:[#allocation2 + $0x20] sm:$0xff]
        %v274 = vld [vmem:[#allocation2 + $0x28] sm:$0xff]
        %v275 = vld [vmem:[#allocation2 + $0x30] sm:$0xff]
        %v276 = vld [vmem:[#allocation2 + $0x38] sm:$0xff]
        %v277 = vld [vmem:[#allocation2 + $0x40] sm:$0xff]
        %v278 = vld [vmem:[#allocation2 + $0x48] sm:$0xff]
        %v279 = vld [vmem:[#allocation2 + $0x50] sm:$0xff]
        %v280 = vld [vmem:[#allocation2 + $0x58] sm:$0xff]
        %v281 = vld [vmem:[#allocation2 + $0x60] sm:$0xff]
        %v282 = vld [vmem:[#allocation2 + $0x68] sm:$0xff]
        %v283 = vld [vmem:[#allocation2 + $0x70] sm:$0xff]
        %v284 = vld [vmem:[#allocation2 + $0x78] sm:$0xff]
        %v285 = vld [vmem:[#allocation2 + $0x80] sm:$0xff]
        %v286 = vld [vmem:[#allocation2 + $0x88] sm:$0xff]
        %v287 = vld [vmem:[#allocation2 + $0x90] sm:$0xff]
        %v288 = vld [vmem:[#allocation2 + $0x98] sm:$0xff]
        %v289 = vld [vmem:[#allocation2 + $0xa0] sm:$0xff]
        %v290 = vld [vmem:[#allocation2 + $0xa8] sm:$0xff]
        %v291 = vld [vmem:[#allocation2 + $0xb0] sm:$0xff]
        %v292 = vld [vmem:[#allocation2 + $0xb8] sm:$0xff]
        %v293 = vld [vmem:[#allocation2 + $0xc0] sm:$0xff]
        %v294 = vld [vmem:[#allocation2 + $0xc8] sm:$0xff]
        %v295 = vld [vmem:[#allocation2 + $0xd0] sm:$0xff]
        %v296 = vld [vmem:[#allocation2 + $0xd8] sm:$0xff]
        %v297 = vld [vmem:[#allocation2 + $0xe0] sm:$0xff]
        %v298 = vld [vmem:[#allocation2 + $0xe8] sm:$0xff]
        %v299 = vld [vmem:[#allocation2 + $0xf0] sm:$0xff]
        %v300 = vld [vmem:[#allocation2 + $0xf8] sm:$0xff]
        %v301 = vld [vmem:[%s227] sm:$0xf]
        %v302 = vld [vmem:[%s227 + $0x4] sm:$0xf]
        %v303 = vld [vmem:[%s227 + $0x8] sm:$0xf]
        %v304 = vld [vmem:[%s227 + $0xc] sm:$0xf]
        %v305 = vld [vmem:[%s227 + $0x10] sm:$0xf]
        %v306 = vld [vmem:[%s227 + $0x14] sm:$0xf]
        %v307 = vld [vmem:[%s227 + $0x18] sm:$0xf]
        %v308 = vld [vmem:[%s227 + $0x1c] sm:$0xf]
        %v309 = vld [vmem:[%s227 + $0x20] sm:$0xf]
        %v310 = vld [vmem:[%s227 + $0x24] sm:$0xf]
        %v311 = vld [vmem:[%s227 + $0x28] sm:$0xf]
        %v312 = vld [vmem:[%s227 + $0x2c] sm:$0xf]
        %v313 = vld [vmem:[%s227 + $0x30] sm:$0xf]
        %v314 = vld [vmem:[%s227 + $0x34] sm:$0xf]
        %v315 = vld [vmem:[%s227 + $0x38] sm:$0xf]
        %v316 = vld [vmem:[%s227 + $0x3c] sm:$0xf]
        %v317 = vld [vmem:[%s227 + $0x40] sm:$0xf]
        %v318 = vld [vmem:[%s227 + $0x44] sm:$0xf]
        %v319 = vld [vmem:[%s227 + $0x48] sm:$0xf]
        %v320 = vld [vmem:[%s227 + $0x4c] sm:$0xf]
        %v321 = vld [vmem:[%s227 + $0x50] sm:$0xf]
        %v322 = vld [vmem:[%s227 + $0x54] sm:$0xf]
        %v323 = vld [vmem:[%s227 + $0x58] sm:$0xf]
        %v324 = vld [vmem:[%s227 + $0x5c] sm:$0xf]
        %v325 = vld [vmem:[%s227 + $0x60] sm:$0xf]
        %v326 = vld [vmem:[%s227 + $0x64] sm:$0xf]
        %v327 = vld [vmem:[%s227 + $0x68] sm:$0xf]
        %v328 = vld [vmem:[%s227 + $0x6c] sm:$0xf]
        %v329 = vld [vmem:[%s227 + $0x70] sm:$0xf]
        %v330 = vld [vmem:[%s227 + $0x74] sm:$0xf]
        %v331 = vld [vmem:[%s227 + $0x78] sm:$0xf]
        %v332 = vld [vmem:[%s227 + $0x7c] sm:$0xf]
        %v333 = vld [vmem:[%s231] sm:$0x3]
        %v366 = vunpack.c.l.b16 %v301
        %v367 = vunpack.c.l.b16 %v302
        %v368 = vunpack.c.l.b16 %v303
        %v369 = vunpack.c.l.b16 %v304
        %v370 = vunpack.c.l.b16 %v305
        %v371 = vunpack.c.l.b16 %v306
        %v372 = vunpack.c.l.b16 %v307
        %v373 = vunpack.c.l.b16 %v308
        %v374 = vunpack.c.l.b16 %v309
        %v375 = vunpack.c.l.b16 %v310
        %v376 = vunpack.c.l.b16 %v311
        %v377 = vunpack.c.l.b16 %v312
        %v378 = vunpack.c.l.b16 %v313
        %v379 = vunpack.c.l.b16 %v314
        %v380 = vunpack.c.l.b16 %v315
        %v381 = vunpack.c.l.b16 %v316
        %v382 = vunpack.c.l.b16 %v317
        %v383 = vunpack.c.l.b16 %v318
        %v384 = vunpack.c.l.b16 %v319
        %v385 = vunpack.c.l.b16 %v320
        %v386 = vunpack.c.l.b16 %v321
        %v387 = vunpack.c.l.b16 %v322
        %v388 = vunpack.c.l.b16 %v323
        %v389 = vunpack.c.l.b16 %v324
        %v390 = vunpack.c.l.b16 %v325
        %v391 = vunpack.c.l.b16 %v326
        %v392 = vunpack.c.l.b16 %v327
        %v393 = vunpack.c.l.b16 %v328
        %v394 = vunpack.c.l.b16 %v329
        %v395 = vunpack.c.l.b16 %v330
        %v396 = vunpack.c.l.b16 %v331
        %v397 = vunpack.c.l.b16 %v332
        %v398 = vpack.c.b16 %v367, %v366
        %v399 = vpack.c.b16 %v369, %v368
        %v400 = vpack.c.b16 %v371, %v370
        %v401 = vpack.c.b16 %v373, %v372
        %v402 = vpack.c.b16 %v375, %v374
        %v403 = vpack.c.b16 %v377, %v376
        %v404 = vpack.c.b16 %v379, %v378
        %v405 = vpack.c.b16 %v381, %v380
        %v406 = vpack.c.b16 %v383, %v382
        %v407 = vpack.c.b16 %v385, %v384
        %v408 = vpack.c.b16 %v387, %v386
        %v409 = vpack.c.b16 %v389, %v388
        %v410 = vpack.c.b16 %v391, %v390
        %v411 = vpack.c.b16 %v393, %v392
        %v412 = vpack.c.b16 %v395, %v394
        %v413 = vpack.c.b16 %v397, %v396
        %vm414 = vcmask 31744
        %v416 = vsel %vm414, %v398, 0
        %v419 = vsel %vm414, %v399, 0
        %v422 = vsel %vm414, %v400, 0
        %v425 = vsel %vm414, %v401, 0
        %v428 = vsel %vm414, %v402, 0
        %v431 = vsel %vm414, %v403, 0
        %v434 = vsel %vm414, %v404, 0
        %v437 = vsel %vm414, %v405, 0
        %v440 = vsel %vm414, %v406, 0
        %v443 = vsel %vm414, %v407, 0
        %v446 = vsel %vm414, %v408, 0
        %v449 = vsel %vm414, %v409, 0
        %v452 = vsel %vm414, %v410, 0
        %v455 = vsel %vm414, %v411, 0
        %v458 = vsel %vm414, %v412, 0
        %v461 = vsel %vm414, %v413, 0
        %vm463 = vcmask 1041408
        %v465 = vsel %vm463, %v333, 0
        %467 = vmatprep.subr.bf16.mxu0 0
        %468 = vmatpush1.bf16.msra.mxu0 0
        %469 = vmatprep.subr.bf16.mxu0 0
        %470 = vmatpush1.bf16.msra.mxu0 0
        %471 = vmatprep.subr.bf16.mxu0 0
        %472 = vmatpush1.bf16.msra.mxu0 0
        %473 = vmatprep.subr.bf16.mxu0 0
        %474 = vmatpush1.bf16.msra.mxu0 0
        %475 = vmatprep.subr.bf16.mxu0 0
        %476 = vmatpush1.bf16.msra.mxu0 0
        %477 = vmatprep.subr.bf16.mxu0 0
        %478 = vmatpush1.bf16.msra.mxu0 0
        %479 = vmatprep.subr.bf16.mxu0 0
        %480 = vmatpush1.bf16.msra.mxu0 0
        %481 = vmatprep.subr.bf16.mxu0 0
        %482 = vmatpush1.bf16.msra.mxu0 %v465
        %483 = vmatprep.subr.bf16.mxu0 0
        %484 = vmatpush2.bf16.msra.mxu0 0
        %485 = vmatprep.subr.bf16.mxu0 0
        %486 = vmatpush2.bf16.msra.mxu0 0
        %487 = vmatprep.subr.bf16.mxu0 0
        %488 = vmatpush2.bf16.msra.mxu0 0
        %489 = vmatprep.subr.bf16.mxu0 0
        %490 = vmatpush2.bf16.msra.mxu0 0
        %491 = vmatprep.subr.bf16.mxu0 0
        %492 = vmatpush2.bf16.msra.mxu0 0
        %493 = vmatprep.subr.bf16.mxu0 0
        %494 = vmatpush2.bf16.msra.mxu0 0
        %495 = vmatprep.subr.bf16.mxu0 0
        %496 = vmatpush2.bf16.msra.mxu0 0
        %497 = vmatprep.subr.bf16.mxu0 0
        %498 = vmatpush2.bf16.msra.mxu0 0
        %499 = vmatprep.mubr.bf16.mxu0 0
        %500 = vmatmul.mubr.bf16.gmra.mxu0 %v416
        %v501 = vpop.f32.mrf.mxu0
        %v502 = vadd.f32 0.0, %v501
        %v503 = vpop.f32.mrf.mxu0
        %v504 = vpop.f32.mrf.mxu0
        %v505 = vadd.f32 0.0, %v504
        %v506 = vpop.f32.mrf.mxu0
        %507 = vmatprep.mubr.bf16.mxu0 0
        %508 = vmatmul.mubr.bf16.gmra.mxu0 %v419
        %v509 = vpop.f32.mrf.mxu0
        %v510 = vadd.f32 0.0, %v509
        %v511 = vpop.f32.mrf.mxu0
        %v512 = vpop.f32.mrf.mxu0
        %v513 = vadd.f32 0.0, %v512
        %v514 = vpop.f32.mrf.mxu0
        %515 = vmatprep.mubr.bf16.mxu0 0
        %516 = vmatmul.mubr.bf16.gmra.mxu0 %v422
        %v517 = vpop.f32.mrf.mxu0
        %v518 = vadd.f32 0.0, %v517
        %v519 = vpop.f32.mrf.mxu0
        %v520 = vpop.f32.mrf.mxu0
        %v521 = vadd.f32 0.0, %v520
        %v522 = vpop.f32.mrf.mxu0
        %523 = vmatprep.mubr.bf16.mxu0 0
        %524 = vmatmul.mubr.bf16.gmra.mxu0 %v425
        %v525 = vpop.f32.mrf.mxu0
        %v526 = vadd.f32 0.0, %v525
        %v527 = vpop.f32.mrf.mxu0
        %v528 = vpop.f32.mrf.mxu0
        %v529 = vadd.f32 0.0, %v528
        %v530 = vpop.f32.mrf.mxu0
        %531 = vmatprep.mubr.bf16.mxu0 0
        %532 = vmatmul.mubr.bf16.gmra.mxu0 %v428
        %v533 = vpop.f32.mrf.mxu0
        %v534 = vadd.f32 0.0, %v533
        %v535 = vpop.f32.mrf.mxu0
        %v536 = vpop.f32.mrf.mxu0
        %v537 = vadd.f32 0.0, %v536
        %v538 = vpop.f32.mrf.mxu0
        %539 = vmatprep.mubr.bf16.mxu0 0
        %540 = vmatmul.mubr.bf16.gmra.mxu0 %v431
        %v541 = vpop.f32.mrf.mxu0
        %v542 = vadd.f32 0.0, %v541
        %v543 = vpop.f32.mrf.mxu0
        %v544 = vpop.f32.mrf.mxu0
        %v545 = vadd.f32 0.0, %v544
        %v546 = vpop.f32.mrf.mxu0
        %547 = vmatprep.mubr.bf16.mxu0 0
        %548 = vmatmul.mubr.bf16.gmra.mxu0 %v434
        %v549 = vpop.f32.mrf.mxu0
        %v550 = vadd.f32 0.0, %v549
        %v551 = vpop.f32.mrf.mxu0
        %v552 = vpop.f32.mrf.mxu0
        %v553 = vadd.f32 0.0, %v552
        %v554 = vpop.f32.mrf.mxu0
        %555 = vmatprep.mubr.bf16.mxu0 0
        %556 = vmatmul.mubr.bf16.gmra.mxu0 %v437
        %v557 = vpop.f32.mrf.mxu0
        %v558 = vadd.f32 0.0, %v557
        %v559 = vpop.f32.mrf.mxu0
        %v560 = vpop.f32.mrf.mxu0
        %v561 = vadd.f32 0.0, %v560
        %v562 = vpop.f32.mrf.mxu0
        %563 = vmatprep.mubr.bf16.mxu0 0
        %564 = vmatmul.mubr.bf16.gmra.mxu0 %v440
        %v565 = vpop.f32.mrf.mxu0
        %v566 = vadd.f32 0.0, %v565
        %v567 = vpop.f32.mrf.mxu0
        %v568 = vpop.f32.mrf.mxu0
        %v569 = vadd.f32 0.0, %v568
        %v570 = vpop.f32.mrf.mxu0
        %571 = vmatprep.mubr.bf16.mxu0 0
        %572 = vmatmul.mubr.bf16.gmra.mxu0 %v443
        %v573 = vpop.f32.mrf.mxu0
        %v574 = vadd.f32 0.0, %v573
        %v575 = vpop.f32.mrf.mxu0
        %v576 = vpop.f32.mrf.mxu0
        %v577 = vadd.f32 0.0, %v576
        %v578 = vpop.f32.mrf.mxu0
        %579 = vmatprep.mubr.bf16.mxu0 0
        %580 = vmatmul.mubr.bf16.gmra.mxu0 %v446
        %v581 = vpop.f32.mrf.mxu0
        %v582 = vadd.f32 0.0, %v581
        %v583 = vpop.f32.mrf.mxu0
        %v584 = vpop.f32.mrf.mxu0
        %v585 = vadd.f32 0.0, %v584
        %v586 = vpop.f32.mrf.mxu0
        %587 = vmatprep.mubr.bf16.mxu0 0
        %588 = vmatmul.mubr.bf16.gmra.mxu0 %v449
        %v589 = vpop.f32.mrf.mxu0
        %v590 = vadd.f32 0.0, %v589
        %v591 = vpop.f32.mrf.mxu0
        %v592 = vpop.f32.mrf.mxu0
        %v593 = vadd.f32 0.0, %v592
        %v594 = vpop.f32.mrf.mxu0
        %595 = vmatprep.mubr.bf16.mxu0 0
        %596 = vmatmul.mubr.bf16.gmra.mxu0 %v452
        %v597 = vpop.f32.mrf.mxu0
        %v598 = vadd.f32 0.0, %v597
        %v599 = vpop.f32.mrf.mxu0
        %v600 = vpop.f32.mrf.mxu0
        %v601 = vadd.f32 0.0, %v600
        %v602 = vpop.f32.mrf.mxu0
        %603 = vmatprep.mubr.bf16.mxu0 0
        %604 = vmatmul.mubr.bf16.gmra.mxu0 %v455
        %v605 = vpop.f32.mrf.mxu0
        %v606 = vadd.f32 0.0, %v605
        %v607 = vpop.f32.mrf.mxu0
        %v608 = vpop.f32.mrf.mxu0
        %v609 = vadd.f32 0.0, %v608
        %v610 = vpop.f32.mrf.mxu0
        %611 = vmatprep.mubr.bf16.mxu0 0
        %612 = vmatmul.mubr.bf16.gmra.mxu0 %v458
        %v613 = vpop.f32.mrf.mxu0
        %v614 = vadd.f32 0.0, %v613
        %v615 = vpop.f32.mrf.mxu0
        %v616 = vpop.f32.mrf.mxu0
        %v617 = vadd.f32 0.0, %v616
        %v618 = vpop.f32.mrf.mxu0
        %619 = vmatprep.mubr.bf16.mxu0 0
        %620 = vmatmul.mubr.bf16.gmra.mxu0 %v461
        %v621 = vpop.f32.mrf.mxu0
        %v622 = vadd.f32 0.0, %v621
        %v623 = vpop.f32.mrf.mxu0
        %v624 = vpop.f32.mrf.mxu0
        %v625 = vadd.f32 0.0, %v624
        %v626 = vpop.f32.mrf.mxu0
        %627 = vdwg.mxu0
        %v628 = vadd.f32 %v269, %v502
        %v629 = vadd.f32 %v270, %v505
        %v630 = vadd.f32 %v271, %v510
        %v631 = vadd.f32 %v272, %v513
        %v632 = vadd.f32 %v273, %v518
        %v633 = vadd.f32 %v274, %v521
        %v634 = vadd.f32 %v275, %v526
        %v635 = vadd.f32 %v276, %v529
        %v636 = vadd.f32 %v277, %v534
        %v637 = vadd.f32 %v278, %v537
        %v638 = vadd.f32 %v279, %v542
        %v639 = vadd.f32 %v280, %v545
        %v640 = vadd.f32 %v281, %v550
        %v641 = vadd.f32 %v282, %v553
        %v642 = vadd.f32 %v283, %v558
        %v643 = vadd.f32 %v284, %v561
        %v644 = vadd.f32 %v285, %v566
        %v645 = vadd.f32 %v286, %v569
        %v646 = vadd.f32 %v287, %v574
        %v647 = vadd.f32 %v288, %v577
        %v648 = vadd.f32 %v289, %v582
        %v649 = vadd.f32 %v290, %v585
        %v650 = vadd.f32 %v291, %v590
        %v651 = vadd.f32 %v292, %v593
        %v652 = vadd.f32 %v293, %v598
        %v653 = vadd.f32 %v294, %v601
        %v654 = vadd.f32 %v295, %v606
        %v655 = vadd.f32 %v296, %v609
        %v656 = vadd.f32 %v297, %v614
        %v657 = vadd.f32 %v298, %v617
        %v658 = vadd.f32 %v299, %v622
        %v659 = vadd.f32 %v300, %v625
        %660 = vst [vmem:[#allocation2] sm:$0xff] %v628
        %661 = vst [vmem:[#allocation2 + $0x8] sm:$0xff] %v629
        %662 = vst [vmem:[#allocation2 + $0x10] sm:$0xff] %v630
        %663 = vst [vmem:[#allocation2 + $0x18] sm:$0xff] %v631
        %664 = vst [vmem:[#allocation2 + $0x20] sm:$0xff] %v632
        %665 = vst [vmem:[#allocation2 + $0x28] sm:$0xff] %v633
        %666 = vst [vmem:[#allocation2 + $0x30] sm:$0xff] %v634
        %667 = vst [vmem:[#allocation2 + $0x38] sm:$0xff] %v635
        %668 = vst [vmem:[#allocation2 + $0x40] sm:$0xff] %v636
        %669 = vst [vmem:[#allocation2 + $0x48] sm:$0xff] %v637
        %670 = vst [vmem:[#allocation2 + $0x50] sm:$0xff] %v638
        %671 = vst [vmem:[#allocation2 + $0x58] sm:$0xff] %v639
        %672 = vst [vmem:[#allocation2 + $0x60] sm:$0xff] %v640
        %673 = vst [vmem:[#allocation2 + $0x68] sm:$0xff] %v641
        %674 = vst [vmem:[#allocation2 + $0x70] sm:$0xff] %v642
        %675 = vst [vmem:[#allocation2 + $0x78] sm:$0xff] %v643
        %676 = vst [vmem:[#allocation2 + $0x80] sm:$0xff] %v644
        %677 = vst [vmem:[#allocation2 + $0x88] sm:$0xff] %v645
        %678 = vst [vmem:[#allocation2 + $0x90] sm:$0xff] %v646
        %679 = vst [vmem:[#allocation2 + $0x98] sm:$0xff] %v647
        %680 = vst [vmem:[#allocation2 + $0xa0] sm:$0xff] %v648
        %681 = vst [vmem:[#allocation2 + $0xa8] sm:$0xff] %v649
        %682 = vst [vmem:[#allocation2 + $0xb0] sm:$0xff] %v650
        %683 = vst [vmem:[#allocation2 + $0xb8] sm:$0xff] %v651
        %684 = vst [vmem:[#allocation2 + $0xc0] sm:$0xff] %v652
        %685 = vst [vmem:[#allocation2 + $0xc8] sm:$0xff] %v653
        %686 = vst [vmem:[#allocation2 + $0xd0] sm:$0xff] %v654
        %687 = vst [vmem:[#allocation2 + $0xd8] sm:$0xff] %v655
        %688 = vst [vmem:[#allocation2 + $0xe0] sm:$0xff] %v656
        %689 = vst [vmem:[#allocation2 + $0xe8] sm:$0xff] %v657
        %690 = vst [vmem:[#allocation2 + $0xf0] sm:$0xff] %v658
        %691 = vst [vmem:[#allocation2 + $0xf8] sm:$0xff] %v659
        // Predicated region
        $region37: #{tpu_custom_call.1} parent=31 // pred_check
          %p692 = pneg %p233
        $region38: #{tpu_custom_call.1} parent=31 // pred_check_branch
          %694 = sbr.rel (%p692) target = $region40
        $region39: #{tpu_custom_call.1} parent=31 // pred_region
          %v695 = vld [vmem:[#allocation2] sm:$0xff]
          %v696 = vld [vmem:[#allocation2 + $0x8] sm:$0xff]
          %v697 = vld [vmem:[#allocation2 + $0x10] sm:$0xff]
          %v698 = vld [vmem:[#allocation2 + $0x18] sm:$0xff]
          %v699 = vld [vmem:[#allocation2 + $0x20] sm:$0xff]
          %v700 = vld [vmem:[#allocation2 + $0x28] sm:$0xff]
          %v701 = vld [vmem:[#allocation2 + $0x30] sm:$0xff]
          %v702 = vld [vmem:[#allocation2 + $0x38] sm:$0xff]
          %v703 = vld [vmem:[#allocation2 + $0x40] sm:$0xff]
          %v704 = vld [vmem:[#allocation2 + $0x48] sm:$0xff]
          %v705 = vld [vmem:[#allocation2 + $0x50] sm:$0xff]
          %v706 = vld [vmem:[#allocation2 + $0x58] sm:$0xff]
          %v707 = vld [vmem:[#allocation2 + $0x60] sm:$0xff]
          %v708 = vld [vmem:[#allocation2 + $0x68] sm:$0xff]
          %v709 = vld [vmem:[#allocation2 + $0x70] sm:$0xff]
          %v710 = vld [vmem:[#allocation2 + $0x78] sm:$0xff]
          %v711 = vld [vmem:[#allocation2 + $0x80] sm:$0xff]
          %v712 = vld [vmem:[#allocation2 + $0x88] sm:$0xff]
          %v713 = vld [vmem:[#allocation2 + $0x90] sm:$0xff]
          %v714 = vld [vmem:[#allocation2 + $0x98] sm:$0xff]
          %v715 = vld [vmem:[#allocation2 + $0xa0] sm:$0xff]
          %v716 = vld [vmem:[#allocation2 + $0xa8] sm:$0xff]
          %v717 = vld [vmem:[#allocation2 + $0xb0] sm:$0xff]
          %v718 = vld [vmem:[#allocation2 + $0xb8] sm:$0xff]
          %v719 = vld [vmem:[#allocation2 + $0xc0] sm:$0xff]
          %v720 = vld [vmem:[#allocation2 + $0xc8] sm:$0xff]
          %v721 = vld [vmem:[#allocation2 + $0xd0] sm:$0xff]
          %v722 = vld [vmem:[#allocation2 + $0xd8] sm:$0xff]
          %v723 = vld [vmem:[#allocation2 + $0xe0] sm:$0xff]
          %v724 = vld [vmem:[#allocation2 + $0xe8] sm:$0xff]
          %v725 = vld [vmem:[#allocation2 + $0xf0] sm:$0xff]
          %v726 = vld [vmem:[#allocation2 + $0xf8] sm:$0xff]
          %v727 = vld [vmem:[%s2] sm:$0x1]
          %v729 = vlaneseq
          %v730 = vshrl.u32 %v729, 7
          %v731 = vsub.s32 0, %v730
          %v732 = vrot.slane %v727, %v731
          %v734 = vadd.f32 %v695, %v732
          %v735 = vadd.f32 %v696, %v732
          %v736 = vadd.f32 %v697, %v732
          %v737 = vadd.f32 %v698, %v732
          %v738 = vadd.f32 %v699, %v732
          %v739 = vadd.f32 %v700, %v732
          %v740 = vadd.f32 %v701, %v732
          %v741 = vadd.f32 %v702, %v732
          %v742 = vadd.f32 %v703, %v732
          %v743 = vadd.f32 %v704, %v732
          %v744 = vadd.f32 %v705, %v732
          %v745 = vadd.f32 %v706, %v732
          %v746 = vadd.f32 %v707, %v732
          %v747 = vadd.f32 %v708, %v732
          %v748 = vadd.f32 %v709, %v732
          %v749 = vadd.f32 %v710, %v732
          %v750 = vadd.f32 %v711, %v732
          %v751 = vadd.f32 %v712, %v732
          %v752 = vadd.f32 %v713, %v732
          %v753 = vadd.f32 %v714, %v732
          %v754 = vadd.f32 %v715, %v732
          %v755 = vadd.f32 %v716, %v732
          %v756 = vadd.f32 %v717, %v732
          %v757 = vadd.f32 %v718, %v732
          %v758 = vadd.f32 %v719, %v732
          %v759 = vadd.f32 %v720, %v732
          %v760 = vadd.f32 %v721, %v732
          %v761 = vadd.f32 %v722, %v732
          %v762 = vadd.f32 %v723, %v732
          %v763 = vadd.f32 %v724, %v732
          %v764 = vadd.f32 %v725, %v732
          %v765 = vadd.f32 %v726, %v732
          %v766 = vmax.f32 %v734, 0.0
          %v767 = vmax.f32 %v735, 0.0
          %v768 = vmax.f32 %v736, 0.0
          %v769 = vmax.f32 %v737, 0.0
          %v770 = vmax.f32 %v738, 0.0
          %v771 = vmax.f32 %v739, 0.0
          %v772 = vmax.f32 %v740, 0.0
          %v773 = vmax.f32 %v741, 0.0
          %v774 = vmax.f32 %v742, 0.0
          %v775 = vmax.f32 %v743, 0.0
          %v776 = vmax.f32 %v744, 0.0
          %v777 = vmax.f32 %v745, 0.0
          %v778 = vmax.f32 %v746, 0.0
          %v779 = vmax.f32 %v747, 0.0
          %v780 = vmax.f32 %v748, 0.0
          %v781 = vmax.f32 %v749, 0.0
          %v782 = vmax.f32 %v750, 0.0
          %v783 = vmax.f32 %v751, 0.0
          %v784 = vmax.f32 %v752, 0.0
          %v785 = vmax.f32 %v753, 0.0
          %v786 = vmax.f32 %v754, 0.0
          %v787 = vmax.f32 %v755, 0.0
          %v788 = vmax.f32 %v756, 0.0
          %v789 = vmax.f32 %v757, 0.0
          %v790 = vmax.f32 %v758, 0.0
          %v791 = vmax.f32 %v759, 0.0
          %v792 = vmax.f32 %v760, 0.0
          %v793 = vmax.f32 %v761, 0.0
          %v794 = vmax.f32 %v762, 0.0
          %v795 = vmax.f32 %v763, 0.0
          %v796 = vmax.f32 %v764, 0.0
          %v797 = vmax.f32 %v765, 0.0
          %798 = vst [vmem:[%s215] sm:$0xff] %v766
          %799 = vst [vmem:[%s215 + $0x8] sm:$0xff] %v767
          %800 = vst [vmem:[%s215 + $0x10] sm:$0xff] %v768
          %801 = vst [vmem:[%s215 + $0x18] sm:$0xff] %v769
          %802 = vst [vmem:[%s215 + $0x20] sm:$0xff] %v770
          %803 = vst [vmem:[%s215 + $0x28] sm:$0xff] %v771
          %804 = vst [vmem:[%s215 + $0x30] sm:$0xff] %v772
          %805 = vst [vmem:[%s215 + $0x38] sm:$0xff] %v773
          %806 = vst [vmem:[%s215 + $0x40] sm:$0xff] %v774
          %807 = vst [vmem:[%s215 + $0x48] sm:$0xff] %v775
          %808 = vst [vmem:[%s215 + $0x50] sm:$0xff] %v776
          %809 = vst [vmem:[%s215 + $0x58] sm:$0xff] %v777
          %810 = vst [vmem:[%s215 + $0x60] sm:$0xff] %v778
          %811 = vst [vmem:[%s215 + $0x68] sm:$0xff] %v779
          %812 = vst [vmem:[%s215 + $0x70] sm:$0xff] %v780
          %813 = vst [vmem:[%s215 + $0x78] sm:$0xff] %v781
          %814 = vst [vmem:[%s215 + $0x80] sm:$0xff] %v782
          %815 = vst [vmem:[%s215 + $0x88] sm:$0xff] %v783
          %816 = vst [vmem:[%s215 + $0x90] sm:$0xff] %v784
          %817 = vst [vmem:[%s215 + $0x98] sm:$0xff] %v785
          %818 = vst [vmem:[%s215 + $0xa0] sm:$0xff] %v786
          %819 = vst [vmem:[%s215 + $0xa8] sm:$0xff] %v787
          %820 = vst [vmem:[%s215 + $0xb0] sm:$0xff] %v788
          %821 = vst [vmem:[%s215 + $0xb8] sm:$0xff] %v789
          %822 = vst [vmem:[%s215 + $0xc0] sm:$0xff] %v790
          %823 = vst [vmem:[%s215 + $0xc8] sm:$0xff] %v791
          %824 = vst [vmem:[%s215 + $0xd0] sm:$0xff] %v792
          %825 = vst [vmem:[%s215 + $0xd8] sm:$0xff] %v793
          %826 = vst [vmem:[%s215 + $0xe0] sm:$0xff] %v794
          %827 = vst [vmem:[%s215 + $0xe8] sm:$0xff] %v795
          %828 = vst [vmem:[%s215 + $0xf0] sm:$0xff] %v796
          %829 = vst [vmem:[%s215 + $0xf8] sm:$0xff] %v797
        $region40: #{tpu_custom_call.1} parent=31 // pred_fallthru
          _
        %s830 = sand.u32 %s123, 1
        %s831 = scalar_lea.sflag [#allocation4], %s830
        %s832 = sand.u32 %s123, 1
        %s833 = smul.addr %s832, 256
        %s834 = scalar_lea.vmem [#allocation3], %s833
        // Predicated region
        $region41: #{tpu_custom_call.1} parent=31 // pred_check
          %p835 = pneg %p133
        $region42: #{tpu_custom_call.1} parent=31 // pred_check_branch
          %837 = sbr.rel (%p835) target = $region44
        $region43: #{tpu_custom_call.1} parent=31 // pred_region
          %s839 = ssub.s32 4096, 4096
          %840 = vsyncadd %s831, %s839
          %s841 = smul.addr %s23, 32
          %s842 = smul.addr %s22, 32
          %s843 = sadd.s32 %s841, %s842
          %s844 = smul.addr %s843, 128
          %s845 = scalar_lea.hbm %s3, %s844
          %s846 = sshll.u32 %s834, 4
          %s847 = int_to_ptr.vmem [resolvable:$true] %s846
          %852 = dma.vmem_to_hbm [thread:$0]  %s847, 4096, %s845, %s831, 128, 128, 8
        $region44: #{tpu_custom_call.1} parent=31 // pred_fallthru
          _
      $region32: #{tpu_custom_call.1} parent=5 // pred_fallthru
        _
      %p853 = scmp.le.s32.totalorder 2, %s12
      // Predicated region
      $region45: #{tpu_custom_call.1} parent=5 // pred_check
        %p854 = pneg %p853
      $region46: #{tpu_custom_call.1} parent=5 // pred_check_branch
        %856 = sbr.rel (%p854) target = $region48
      $region47: #{tpu_custom_call.1} parent=5 // pred_region
        %s857 = ssub.s32 %s12, 2
        // Predicated region
        $region49: #{tpu_custom_call.1} parent=47 // pred_check
          %p858 = pneg %p139
        $region50: #{tpu_custom_call.1} parent=47 // pred_check_branch
          %860 = sbr.rel (%p858) target = $region52
        $region51: #{tpu_custom_call.1} parent=47 // pred_region
          %s861 = sand.u32 %s124, 1
          %s862 = scalar_lea.sflag [#allocation4], %s861
          %s863 = sand.u32 %s124, 1
          %s864 = smul.addr %s863, 256
          %s865 = scalar_lea.vmem [#allocation3], %s864
          %866 = dma.done %s862, 4096
        $region52: #{tpu_custom_call.1} parent=47 // pred_fallthru
          _
      $region48: #{tpu_custom_call.1} parent=5 // pred_fallthru
        _
    $region6: #{tpu_custom_call.1} parent=1 // loop_footer
      %s16 = sadd.s32 1, %s12
    $region7: #{tpu_custom_call.1} parent=1 // loop_footer_branch
      %11 = sbr.rel target = $region3
    $region8: #{tpu_custom_call.1} parent=1 // loop_exit
      _
    %867 = vsyncpa [#allocation4], 1
    %s868 = scalar_lea.sflag [#allocation4], 1
    %869 = vsyncpa %s868, 1

</llo_original>
